<compile_context>
chip_gen: v7x
topology: tpu7x:2x2x1
jax: 0.10.0
libtpu: 0.0.40
codegen_flags: <defaults>
</compile_context>

<pallas_src>
import functools

import jax
import jax.numpy as jnp
from jax import lax
from jax.experimental import pallas as pl
from jax.experimental.pallas import tpu as pltpu

BN_EPS = 1e-5
LEAKY_SLOPE = 0.1


def _round_up(x, m):
    return (x + m - 1) // m * m


def _half(v, m):
    return max(m, _round_up(v // 2, m))


def _vmem_caps():
    """(tile working-set budget, scoped-VMEM compiler limit) in bytes."""
    try:
        cap = int(pltpu.get_tpu_info().vmem_capacity_bytes)
    except Exception:
        cap = 64 * 1024 * 1024  # conservative fallback (v7x has 64 MiB / TC)
    return (cap * 7) // 10, (cap * 85) // 100


def _linear_block_kernel(x_ref, a_ref, b_ref, w_ref, o_ref, *, mm_dtype):
    # x_ref: (TM, TK)        f32 activation tile
    # a_ref: (num_k, 1, TK)  f32 folded BN scale   (resident, DMA'd once)
    # b_ref: (num_k, 1, TK)  f32 folded BN shift   (resident, DMA'd once)
    # w_ref: (TK, TN)        mm_dtype weight tile, K-major (pre-transposed)
    # o_ref: (TM, TN)        f32 output tile, resident across the k axis
    k = pl.program_id(2)

    # Folded eval-mode BatchNorm1d + LeakyReLU(0.1); Dropout(p=0.0) = identity.
    h = x_ref[...] * a_ref[k] + b_ref[k]
    h = jnp.where(h >= 0, h, LEAKY_SLOPE * h)

    # Partial matmul on the MXU (bf16 operands by default, f32 accumulation).
    part = jnp.dot(h.astype(mm_dtype), w_ref[...],
                   preferred_element_type=jnp.float32)

    @pl.when(k == 0)
    def _():
        o_ref[...] = part

    @pl.when(k != 0)
    def _():
        o_ref[...] = o_ref[...] + part


def prepare_linear_params(gamma, beta, running_mean, running_var, weight, *,
                          matmul_dtype=jnp.bfloat16, eps=BN_EPS,
                          tk_max=None, tn_max=None, tm_hint=256):
    """One-time (hoisted) prep: BN fold + weight transpose/cast/pad + tiles.

    nn.Linear weights and BN stats are static, so none of this belongs on the
    per-call path.
    """
    c_out, c_in = weight.shape
    budget, vmem_limit = _vmem_caps()
    wb = jnp.dtype(matmul_dtype).itemsize

    tk = _round_up(c_in, 128)
    tn = _round_up(c_out, 128)
    if tk_max is not None:
        tk = min(tk, max(128, _round_up(tk_max, 128)))
    if tn_max is not None:
        tn = min(tn, max(128, _round_up(tn_max, 128)))

    def working_set(tm_, tn_, tk_):
        return (2 * tm_ * tk_ * 4        # x tiles (f32, double-buffered)
                + 2 * tk_ * tn_ * wb     # W tiles (double-buffered)
                + 2 * tm_ * tn_ * 4      # f32 output tiles
                + 2 * c_in * 4 + 4096)   # resident BN scale/shift + slack

    # Prefer full-N (no x re-reads) and large M (few W re-reads); shrink K
    # first -- a deeper reduction grid adds no HBM traffic, only step overhead.
    while working_set(tm_hint, tn, tk) > budget:
        if tk > 512:
            tk = _half(tk, 128)
        elif tm_hint > 64:
            tm_hint = _half(tm_hint, 8)
        elif tn > 512:
            tn = _half(tn, 128)
        elif tk > 128:
            tk = _half(tk, 128)
        elif tn > 128:
            tn = _half(tn, 128)
        elif tm_hint > 8:
            tm_hint = _half(tm_hint, 8)
        else:
            break

    cin_p = _round_up(c_in, tk)
    cout_p = _round_up(c_out, tn)
    num_k = cin_p // tk

    # Fold eval-mode BatchNorm1d into per-channel scale/shift.
    scale = gamma.astype(jnp.float32) * lax.rsqrt(
        running_var.astype(jnp.float32) + eps)
    shift = beta.astype(jnp.float32) - running_mean.astype(jnp.float32) * scale
    # Padded channels get scale = shift = 0 -> h == 0 there (exact).
    a_p = jnp.pad(scale, (0, cin_p - c_in)).reshape(num_k, 1, tk)
    b_p = jnp.pad(shift, (0, cin_p - c_in)).reshape(num_k, 1, tk)

    # K-major, lane-dense-on-N weight (canonical MXU RHS layout); cast + pad
    # once.  Padded rows/cols are zero, so results stay exact.
    w_km = weight.astype(matmul_dtype).T
    w_p = jnp.pad(w_km, ((0, cin_p - c_in), (0, cout_p - c_out)))

    return dict(w=w_p, a=a_p, b=b_p, tk=tk, tn=tn,
                c_in=c_in, c_out=c_out, cin_p=cin_p, cout_p=cout_p,
                matmul_dtype=matmul_dtype,
                vmem_budget=budget, vmem_limit=vmem_limit)


def linear_block_apply(x, params, *, tm_max=1024):
    """Hot path: folded BN + LeakyReLU + bias-free Linear as one Pallas call.

    x: (N, C_in) -> (N, C_out), float32 output.
    """
    n, c_in = x.shape
    assert c_in == params["c_in"], "in_channels mismatch"
    tk, tn = params["tk"], params["tn"]
    cin_p, cout_p = params["cin_p"], params["cout_p"]
    c_out = params["c_out"]
    mm_dtype = params["matmul_dtype"]
    wb = jnp.dtype(mm_dtype).itemsize
    budget = params["vmem_budget"]

    def working_set(tm_):
        return (2 * tm_ * tk * 4 + 2 * tk * tn * wb + 2 * tm_ * tn * 4
                + 2 * cin_p * 4 + 4096)

    tm = min(_round_up(max(n, 8), 8), tm_max)
    while working_set(tm) > budget and tm > 8:
        tm = _half(tm, 8)

    # v7x has 2 TensorCores: keep >= 2 parallel grid blocks when possible.
    if (cout_p // tn) * (_round_up(n, tm) // tm) < 2 and n > 8:
        tm = min(tm, _round_up(-(-n // 2), 8))

    n_p = _round_up(n, tm)

    x = x.astype(jnp.float32)
    if (n_p, cin_p) != (n, c_in):
        x_p = jnp.pad(x, ((0, n_p - n), (0, cin_p - c_in)))
    else:
        x_p = x  # already tile-aligned: no extra HBM read+write pass

    grid = (n_p // tm, cout_p // tn, cin_p // tk)
    num_i, num_j, num_k = grid

    cost = pl.CostEstimate(
        flops=2 * n_p * cin_p * cout_p,
        transcendentals=0,
        bytes_accessed=(num_j * n_p * cin_p * 4          # x read num_j times
                        + num_i * cin_p * cout_p * wb    # W read num_i times
                        + n_p * cout_p * 4               # output write
                        + 2 * cin_p * 4))                # BN scale/shift

    kernel = functools.partial(_linear_block_kernel, mm_dtype=mm_dtype)

    out_p = pl.pallas_call(
        kernel,
        out_shape=jax.ShapeDtypeStruct((n_p, cout_p), jnp.float32),
        grid_spec=pltpu.PrefetchScalarGridSpec(
            num_scalar_prefetch=0,
            grid=grid,
            in_specs=[
                pl.BlockSpec((tm, tk), lambda i, j, k: (i, k)),            # x
                pl.BlockSpec((num_k, 1, tk), lambda i, j, k: (0, 0, 0)),   # BN a
                pl.BlockSpec((num_k, 1, tk), lambda i, j, k: (0, 0, 0)),   # BN b
                pl.BlockSpec((tk, tn), lambda i, j, k: (k, j)),            # W
            ],
            out_specs=pl.BlockSpec((tm, tn), lambda i, j, k: (i, j)),
        ),
        compiler_params=pltpu.CompilerParams(
            dimension_semantics=("parallel", "parallel", "arbitrary"),
            vmem_limit_bytes=params["vmem_limit"],
        ),
        cost_estimate=cost,
    )(x_p, params["a"], params["b"], params["w"])

    if (n_p, cout_p) != (n, c_out):
        return out_p[:n, :c_out]
    return out_p


def linear_block(x, gamma, beta, running_mean, running_var, weight, *,
                 matmul_dtype=jnp.bfloat16, tk_max=None, tn_max=None,
                 tm_max=1024):
    """Convenience one-shot wrapper (prep NOT hoisted). For real use, call
    prepare_linear_params() once and linear_block_apply() per forward pass."""
    params = prepare_linear_params(gamma, beta, running_mean, running_var,
                                   weight, matmul_dtype=matmul_dtype,
                                   tk_max=tk_max, tn_max=tn_max)
    return linear_block_apply(x, params, tm_max=tm_max)


def _reference(x, gamma, beta, running_mean, running_var, weight):
    h = (x - running_mean) / jnp.sqrt(running_var + BN_EPS) * gamma + beta
    h = jnp.where(h >= 0, h, LEAKY_SLOPE * h)
    return h @ weight.T


if __name__ == "__main__":
    key = jax.random.PRNGKey(0)
    k_x, k_g, k_b, k_m, k_v, k_w = jax.random.split(key, 6)

    # ---- Small test consistent with the module's 2-D (N, C_in) input ----
    batch, in_channels, out_channels = 16, 32, 64
    x = jax.random.normal(k_x, (batch, in_channels), jnp.float32)
    gamma = 1.0 + 0.1 * jax.random.normal(k_g, (in_channels,), jnp.float32)
    beta = 0.1 * jax.random.normal(k_b, (in_channels,), jnp.float32)
    running_mean = 0.1 * jax.random.normal(k_m, (in_channels,), jnp.float32)
    running_var = jnp.abs(1.0 + 0.1 * jax.random.normal(
        k_v, (in_channels,), jnp.float32))
    bound = 1.0 / (in_channels ** 0.5)
    weight = jax.random.uniform(k_w, (out_channels, in_channels), jnp.float32,
                                minval=-bound, maxval=bound)

    ref = _reference(x, gamma, beta, running_mean, running_var, weight)

    # Hoisted prep + default bf16-operand matmul (f32 accumulation).
    params = prepare_linear_params(gamma, beta, running_mean, running_var,
                                   weight)
    out = jax.block_until_ready(linear_block_apply(x, params))
    assert out.shape == (batch, out_channels)
    assert jnp.allclose(out, ref, atol=2e-2, rtol=2e-2)

    # Exact f32 matmul path.
    out_f32 = jax.block_until_ready(
        linear_block(x, gamma, beta, running_mean, running_var, weight,
                     matmul_dtype=jnp.float32))
    assert jnp.allclose(out_f32, ref, atol=1e-5, rtol=1e-5)

    # ---- Multi-tile grid test: forces num_i, num_j, num_k > 1 to exercise
    # the k-resident output accumulation, padding, and resident BN blocks. ----
    k2 = jax.random.split(key, 7)
    n2, cin2, cout2 = 24, 320, 200
    x2 = jax.random.normal(k2[0], (n2, cin2), jnp.float32)
    g2 = 1.0 + 0.1 * jax.random.normal(k2[1], (cin2,), jnp.float32)
    b2 = 0.1 * jax.random.normal(k2[2], (cin2,), jnp.float32)
    m2 = 0.1 * jax.random.normal(k2[3], (cin2,), jnp.float32)
    v2 = jnp.abs(1.0 + 0.1 * jax.random.normal(k2[4], (cin2,), jnp.float32))
    bnd2 = 1.0 / (cin2 ** 0.5)
    w2 = jax.random.uniform(k2[5], (cout2, cin2), jnp.float32,
                            minval=-bnd2, maxval=bnd2)
    out2 = jax.block_until_ready(
        linear_block(x2, g2, b2, m2, v2, w2, matmul_dtype=jnp.float32,
                     tk_max=128, tn_max=128, tm_max=8))
    ref2 = _reference(x2, g2, b2, m2, v2, w2)
    assert out2.shape == (n2, cout2)
    assert jnp.allclose(out2, ref2, atol=1e-4, rtol=1e-4)

    print("KERNEL_OK")
</pallas_src>

<mosaic_0001>
module attributes {stable_mosaic.version = 11 : i64} {
  func.func @_linear_block_kernel(%arg0: i32, %arg1: i32, %arg2: i32, %arg3: memref<8x128xf32, #tpu.memory_space<vmem>>, %arg4: memref<1x1x128xf32, #tpu.memory_space<vmem>>, %arg5: memref<1x1x128xf32, #tpu.memory_space<vmem>>, %arg6: memref<128x128xbf16, #tpu.memory_space<vmem>>, %arg7: memref<8x128xf32, #tpu.memory_space<vmem>>) attributes {dimension_semantics = [#tpu.dimension_semantics<parallel>, #tpu.dimension_semantics<parallel>, #tpu.dimension_semantics<arbitrary>], iteration_bounds = array<i64: 2, 1, 1>, scalar_prefetch = 0 : i64, scratch_operands = 0 : i64, tpu.core_type = #tpu.core_type<tc>, window_params = [{transform_indices = @transform_0, window_bounds = array<i64: 8, 128>}, {pipeline_mode = #tpu.pipeline_mode<synchronous>, transform_indices = @transform_1, window_bounds = array<i64: 1, 1, 128>}, {pipeline_mode = #tpu.pipeline_mode<synchronous>, transform_indices = @transform_2, window_bounds = array<i64: 1, 1, 128>}, {transform_indices = @transform_3, window_bounds = array<i64: 128, 128>}, {transform_indices = @transform_4, window_bounds = array<i64: 8, 128>}]} {
    %c0 = arith.constant 0 : index
    %c0_0 = arith.constant 0 : index
    %0 = vector.load %arg3[%c0, %c0_0] : memref<8x128xf32, #tpu.memory_space<vmem>>, vector<8x128xf32>
    %1 = arith.index_cast %arg2 : i32 to index
    %c0_1 = arith.constant 0 : index
    %c0_2 = arith.constant 0 : index
    %2 = vector.load %arg4[%1, %c0_1, %c0_2] : memref<1x1x128xf32, #tpu.memory_space<vmem>>, vector<1x1x128xf32>
    %3 = vector.shape_cast %2 : vector<1x1x128xf32> to vector<1x128xf32>
    %4 = vector.broadcast %3 : vector<1x128xf32> to vector<8x128xf32>
    %5 = arith.mulf %0, %4 : vector<8x128xf32>
    %6 = arith.index_cast %arg2 : i32 to index
    %c0_3 = arith.constant 0 : index
    %c0_4 = arith.constant 0 : index
    %7 = vector.load %arg5[%6, %c0_3, %c0_4] : memref<1x1x128xf32, #tpu.memory_space<vmem>>, vector<1x1x128xf32>
    %8 = vector.shape_cast %7 : vector<1x1x128xf32> to vector<1x128xf32>
    %9 = vector.broadcast %8 : vector<1x128xf32> to vector<8x128xf32>
    %10 = arith.addf %5, %9 : vector<8x128xf32>
    %cst = arith.constant 0.000000e+00 : f32
    %11 = vector.broadcast %cst : f32 to vector<8x128xf32>
    %12 = arith.cmpf oge, %10, %11 : vector<8x128xf32>
    %cst_5 = arith.constant 1.000000e-01 : f32
    %13 = vector.broadcast %cst_5 : f32 to vector<8x128xf32>
    %14 = arith.mulf %13, %10 : vector<8x128xf32>
    %15 = arith.select %12, %10, %14 : vector<8x128xi1>, vector<8x128xf32>
    %16 = arith.truncf %15 : vector<8x128xf32> to vector<8x128xbf16>
    %c0_6 = arith.constant 0 : index
    %c0_7 = arith.constant 0 : index
    %17 = vector.load %arg6[%c0_6, %c0_7] : memref<128x128xbf16, #tpu.memory_space<vmem>>, vector<128x128xbf16>
    %cst_8 = arith.constant dense<0.000000e+00> : vector<8x128xf32>
    %18 = tpu.matmul %16, %17, %cst_8 {dimension_numbers = #tpu.dot_dimension_numbers<[1], [0], [0], [1], [0, 0, 1, 1], [], []>} : vector<8x128xbf16>, vector<128x128xbf16>, vector<8x128xf32> -> vector<8x128xf32>
    %c0_i32 = arith.constant 0 : i32
    %19 = arith.cmpi eq, %arg2, %c0_i32 : i32
    %20 = arith.extui %19 : i1 to i32
    %c0_i32_9 = arith.constant 0 : i32
    %21 = arith.cmpi ne, %20, %c0_i32_9 : i32
    scf.if %21 {
      %c0_12 = arith.constant 0 : index
      %c0_13 = arith.constant 0 : index
      %25 = vector.load %arg7[%c0_12, %c0_13] : memref<8x128xf32, #tpu.memory_space<vmem>>, vector<8x128xf32>
      tpu.vector_store %arg7[%c0_12, %c0_13], %18 {strides = array<i32>} : memref<8x128xf32, #tpu.memory_space<vmem>>, vector<8x128xf32>,
    } else {
    }
    %c0_i32_10 = arith.constant 0 : i32
    %22 = arith.cmpi ne, %arg2, %c0_i32_10 : i32
    %23 = arith.extui %22 : i1 to i32
    %c0_i32_11 = arith.constant 0 : i32
    %24 = arith.cmpi ne, %23, %c0_i32_11 : i32
    scf.if %24 {
      %c0_12 = arith.constant 0 : index
      %c0_13 = arith.constant 0 : index
      %25 = vector.load %arg7[%c0_12, %c0_13] : memref<8x128xf32, #tpu.memory_space<vmem>>, vector<8x128xf32>
      %26 = arith.addf %25, %18 : vector<8x128xf32>
      %c0_14 = arith.constant 0 : index
      %c0_15 = arith.constant 0 : index
      %27 = vector.load %arg7[%c0_14, %c0_15] : memref<8x128xf32, #tpu.memory_space<vmem>>, vector<8x128xf32>
      tpu.vector_store %arg7[%c0_14, %c0_15], %26 {strides = array<i32>} : memref<8x128xf32, #tpu.memory_space<vmem>>, vector<8x128xf32>,
    } else {
    }
    return
  }
  func.func @transform_0(%arg0: i32, %arg1: i32, %arg2: i32) -> (i32, i32) {
    %c0_i32 = arith.constant 0 : i32
    return %arg0, %arg2 : i32, i32
  }
  func.func @transform_1(%arg0: i32, %arg1: i32, %arg2: i32) -> (i32, i32, i32) {
    %c0_i32 = arith.constant 0 : i32
    %c0_i32_0 = arith.constant 0 : i32
    %c0_i32_1 = arith.constant 0 : i32
    %c0_i32_2 = arith.constant 0 : i32
    return %c0_i32, %c0_i32_0, %c0_i32_1 : i32, i32, i32
  }
  func.func @transform_2(%arg0: i32, %arg1: i32, %arg2: i32) -> (i32, i32, i32) {
    %c0_i32 = arith.constant 0 : i32
    %c0_i32_0 = arith.constant 0 : i32
    %c0_i32_1 = arith.constant 0 : i32
    %c0_i32_2 = arith.constant 0 : i32
    return %c0_i32, %c0_i32_0, %c0_i32_1 : i32, i32, i32
  }
  func.func @transform_3(%arg0: i32, %arg1: i32, %arg2: i32) -> (i32, i32) {
    %c0_i32 = arith.constant 0 : i32
    return %arg2, %arg1 : i32, i32
  }
  func.func @transform_4(%arg0: i32, %arg1: i32, %arg2: i32) -> (i32, i32) {
    %c0_i32 = arith.constant 0 : i32
    return %arg0, %arg1 : i32, i32
  }
}

</mosaic_0001>

<llo_original>
// kernel: tpu_custom_call.1
$region0: #{tpu_custom_call.1}
  #allocation0 [shape = 'u32[]', space=smem, size = 0x4, offset = 0x4, fixed_abs, tag = 'smem constant byte address 0x4 - core index']
  #allocation1 [shape = 'u32[144,128]{1,0:T(1,128)}', space=vmem, size = 0x12000, scoped, tag = 'internal scratch']
  %s0 = inlined_call_operand.hbm [shape: f32[16,128], index: 0, kind: input, shape index: {}]
  %s1 = inlined_call_operand.vmem [shape: f32[1,1,128], index: 1, kind: input, shape index: {}]
  %s2 = inlined_call_operand.vmem [shape: f32[1,1,128], index: 2, kind: input, shape index: {}]
  %s3 = inlined_call_operand.hbm [shape: bf16[128,128], index: 3, kind: input, shape index: {}]
  %s4 = inlined_call_operand.hbm [shape: f32[16,128], index: 4, kind: output, shape index: {}]
  %s5 = sld [smem:[#allocation0]]
  $region65: #{tpu_custom_call.1} parent=0
    _
  %s7 = ssub.s32 1, %s5
  %s8 = scalar_select 0, %s7, %s5
  $region1: #{tpu_custom_call.1} parent=0
    #allocation2 [shape = 'u8[8192]{0}', space=vmem, size = 0x2000, scoped, tag = 'input window, operand 0']
    #allocation3 [shape = 's32[2]{0}', space=sflag, size = 0x8, scoped, tag = 'scoped memory for tpu_custom_call.1']
    #allocation4 [shape = 's32[2]{0}', space=sflag, size = 0x8, scoped, tag = 'scoped memory for tpu_custom_call.1']
    #allocation5 [shape = 'u8[32768]{0}', space=vmem, size = 0x8000, scoped, tag = 'input window, operand 3, single buffered']
    #allocation6 [shape = 's32[1]{0}', space=sflag, size = 0x4, scoped, tag = 'scoped memory for tpu_custom_call.1']
    #allocation7 [shape = 'u8[8192]{0}', space=vmem, size = 0x2000, scoped, tag = 'output window, operand 0']
    %9 = vsyncpa [#allocation3], 0
    %s10 = scalar_lea.sflag [#allocation3], 1
    %11 = vsyncpa %s10, 0
    %12 = vsyncpa [#allocation6], 0
    %13 = vsyncpa [#allocation4], 0
    %s14 = scalar_lea.sflag [#allocation4], 1
    %15 = vsyncpa %s14, 0
    loop: start=0, step=1, limit=4
    $region2: #{tpu_custom_call.1} parent=1 // loop_pre_header
      _
    $region3: #{tpu_custom_call.1} parent=1 // loop_header
      %s17 = sphi 0, %s21
      %p18 = scmp.ge.s32.totalorder %s17, 4
      %s24 = sphi 0, %s43
      %s25 = sphi 0, %s39
      %s26 = sphi 0, %s35
      %s27 = sphi 0, %s24
      %s28 = sphi 0, %s25
      %s29 = sphi 0, %s26
      %s30 = sphi 0, %s27
      %s31 = sphi 0, %s28
      %s32 = sphi 0, %s29
      %s48 = sphi 0, %s50
      %s51 = sphi 0, %s48
      %s52 = sphi 0, %s51
      %s68 = sphi 0, %s52
      %s72 = sphi 0, %s72
      %s74 = sphi 0, %s72
      %s75 = sphi 0, %s74
      %s89 = sphi 0, %s75
      %s93 = sphi 0, %s93
      %s95 = sphi 0, %s93
      %s96 = sphi 0, %s95
      %s110 = sphi 0, %s96
      %s118 = sphi 0, %s120
      %s121 = sphi 0, %s118
      %s122 = sphi 0, %s121
      %s138 = sphi 0, %s122
      %s146 = sphi 0, %s148
      %s149 = sphi 0, %s146
      %s150 = sphi 0, %s149
      %s166 = sphi 0, %s150
    $region4: #{tpu_custom_call.1} parent=1 // loop_header_branch
      %20 = sbr.rel (%p18) target = $region8
    $region5: #{tpu_custom_call.1} parent=1 // loop_body
      %s22 = ssub.s32 %s17, 1
      %s23 = ssub.s32 %s17, 2
      %s33 = sadd.s32 1, %s26
      %p34 = scmp.ge.s32.totalorder %s33, 1
      %s35 = scalar_select %p34, 0, %s33
      %s36 = sadd.s32 1, %s25
      %s37 = scalar_select %p34, %s36, %s25
      %p38 = scmp.ge.s32.totalorder %s37, 1
      %s39 = scalar_select %p38, 0, %s37
      %s40 = sadd.s32 1, %s24
      %s41 = scalar_select %p38, %s40, %s24
      %p42 = scmp.ge.s32.totalorder %s41, 2
      %s43 = scalar_select %p42, 0, %s41
      %s44 = ssub.s32 %s24, %s43
      %s45 = ssub.s32 %s26, %s35
      %s46 = sor.u32 %s44, %s45
      %p47 = scmp.eq.s32.totalorder %s46, 0
      %s49 = sadd.s32 %s48, 1
      %s50 = scalar_select %p47, %s48, %s49
      %p53 = pneg %p47
      %p54 = scmp.eq.s32.totalorder %s17, 1
      %p55 = por %p53, %p54
      %p56 = scmp.ne.s32.totalorder %s48, %s51
      %p57 = scmp.eq.s32.totalorder %s17, 0
      %p58 = por %p56, %p57
      %p59 = scmp.ne.s32.totalorder %s48, %s51
      %p60 = scmp.eq.s32.totalorder %s22, 1
      %p61 = por %p59, %p60
      %p62 = scmp.ne.s32.totalorder %s51, %s52
      %p63 = scmp.eq.s32.totalorder %s22, 0
      %p64 = por %p62, %p63
      %p65 = scmp.ne.s32.totalorder %s51, %s52
      %p66 = scmp.eq.s32.totalorder %s23, 1
      %p67 = por %p65, %p66
      %p69 = scmp.ne.s32.totalorder %s52, %s68
      %p70 = scmp.eq.s32.totalorder %s23, 0
      %p71 = por %p69, %p70
      %s73 = sadd.s32 %s72, 1
      %p76 = scmp.eq.s32.totalorder %s17, 1
      %p77 = scmp.ne.s32.totalorder %s72, %s74
      %p78 = scmp.eq.s32.totalorder %s17, 0
      %p79 = por %p77, %p78
      %p80 = scmp.ne.s32.totalorder %s72, %s74
      %p81 = scmp.eq.s32.totalorder %s22, 1
      %p82 = por %p80, %p81
      %p83 = scmp.ne.s32.totalorder %s74, %s75
      %p84 = scmp.eq.s32.totalorder %s22, 0
      %p85 = por %p83, %p84
      %p86 = scmp.ne.s32.totalorder %s74, %s75
      %p87 = scmp.eq.s32.totalorder %s23, 1
      %p88 = por %p86, %p87
      %p90 = scmp.ne.s32.totalorder %s75, %s89
      %p91 = scmp.eq.s32.totalorder %s23, 0
      %p92 = por %p90, %p91
      %s94 = sadd.s32 %s93, 1
      %p97 = scmp.eq.s32.totalorder %s17, 1
      %p98 = scmp.ne.s32.totalorder %s93, %s95
      %p99 = scmp.eq.s32.totalorder %s17, 0
      %p100 = por %p98, %p99
      %p101 = scmp.ne.s32.totalorder %s93, %s95
      %p102 = scmp.eq.s32.totalorder %s22, 1
      %p103 = por %p101, %p102
      %p104 = scmp.ne.s32.totalorder %s95, %s96
      %p105 = scmp.eq.s32.totalorder %s22, 0
      %p106 = por %p104, %p105
      %p107 = scmp.ne.s32.totalorder %s95, %s96
      %p108 = scmp.eq.s32.totalorder %s23, 1
      %p109 = por %p107, %p108
      %p111 = scmp.ne.s32.totalorder %s96, %s110
      %p112 = scmp.eq.s32.totalorder %s23, 0
      %p113 = por %p111, %p112
      %s114 = ssub.s32 %s26, %s35
      %s115 = ssub.s32 %s25, %s39
      %s116 = sor.u32 %s114, %s115
      %p117 = scmp.eq.s32.totalorder %s116, 0
      %s119 = sadd.s32 %s118, 1
      %s120 = scalar_select %p117, %s118, %s119
      %p123 = pneg %p117
      %p124 = scmp.eq.s32.totalorder %s17, 1
      %p125 = por %p123, %p124
      %p126 = scmp.ne.s32.totalorder %s118, %s121
      %p127 = scmp.eq.s32.totalorder %s17, 0
      %p128 = por %p126, %p127
      %p129 = scmp.ne.s32.totalorder %s118, %s121
      %p130 = scmp.eq.s32.totalorder %s22, 1
      %p131 = por %p129, %p130
      %p132 = scmp.ne.s32.totalorder %s121, %s122
      %p133 = scmp.eq.s32.totalorder %s22, 0
      %p134 = por %p132, %p133
      %p135 = scmp.ne.s32.totalorder %s121, %s122
      %p136 = scmp.eq.s32.totalorder %s23, 1
      %p137 = por %p135, %p136
      %p139 = scmp.ne.s32.totalorder %s122, %s138
      %p140 = scmp.eq.s32.totalorder %s23, 0
      %p141 = por %p139, %p140
      %s142 = ssub.s32 %s24, %s43
      %s143 = ssub.s32 %s25, %s39
      %s144 = sor.u32 %s142, %s143
      %p145 = scmp.eq.s32.totalorder %s144, 0
      %s147 = sadd.s32 %s146, 1
      %s148 = scalar_select %p145, %s146, %s147
      %p151 = pneg %p145
      %p152 = scmp.eq.s32.totalorder %s17, 1
      %p153 = por %p151, %p152
      %p154 = scmp.ne.s32.totalorder %s146, %s149
      %p155 = scmp.eq.s32.totalorder %s17, 0
      %p156 = por %p154, %p155
      %p157 = scmp.ne.s32.totalorder %s146, %s149
      %p158 = scmp.eq.s32.totalorder %s22, 1
      %p159 = por %p157, %p158
      %p160 = scmp.ne.s32.totalorder %s149, %s150
      %p161 = scmp.eq.s32.totalorder %s22, 0
      %p162 = por %p160, %p161
      %p163 = scmp.ne.s32.totalorder %s149, %s150
      %p164 = scmp.eq.s32.totalorder %s23, 1
      %p165 = por %p163, %p164
      %p167 = scmp.ne.s32.totalorder %s150, %s166
      %p168 = scmp.eq.s32.totalorder %s23, 0
      %p169 = por %p167, %p168
      %p170 = scmp.le.s32.totalorder 1, %s17
      %p171 = scmp.lt.s32.totalorder %s17, 3
      %p172 = pnand %p170, %p171
      %p173 = pneg %p172
      // Predicated region
      $region9: #{tpu_custom_call.1} parent=5 // pred_check
        _
      $region10: #{tpu_custom_call.1} parent=5 // pred_check_branch
        %175 = sbr.rel (%p172) target = $region12
      $region11: #{tpu_custom_call.1} parent=5 // pred_region
        %s176 = ssub.s32 %s17, 1
        // Predicated region
        $region13: #{tpu_custom_call.1} parent=11 // pred_check
          %p177 = pneg %p85
        $region14: #{tpu_custom_call.1} parent=11 // pred_check_branch
          %179 = sbr.rel (%p177) target = $region16
        $region15: #{tpu_custom_call.1} parent=11 // pred_region
          _
        $region16: #{tpu_custom_call.1} parent=11 // pred_fallthru
          _
        // Predicated region
        $region17: #{tpu_custom_call.1} parent=11 // pred_check
          %p180 = pneg %p106
        $region18: #{tpu_custom_call.1} parent=11 // pred_check_branch
          %182 = sbr.rel (%p180) target = $region20
        $region19: #{tpu_custom_call.1} parent=11 // pred_region
          _
        $region20: #{tpu_custom_call.1} parent=11 // pred_fallthru
          _
        // Predicated region
        $region21: #{tpu_custom_call.1} parent=11 // pred_check
          %p183 = pneg %p134
        $region22: #{tpu_custom_call.1} parent=11 // pred_check_branch
          %185 = sbr.rel (%p183) target = $region24
        $region23: #{tpu_custom_call.1} parent=11 // pred_region
          %s186 = smul.u32 16, %s29
          %s188 = ssub.s32 1024, 1024
          %189 = vsyncadd [#allocation6], %s188
          %s190 = sadd.s32 %s28, %s186
          %s191 = smul.addr %s190, 64
          %s192 = scalar_lea.hbm %s3, %s191
          %s193 = sshll.u32 [#allocation5], 4
          %s194 = int_to_ptr.vmem [resolvable:$true] %s193
          %199 = dma.hbm_to_vmem [thread:$0]  %s192, 1024, %s194, [#allocation6], 64, 64, 4
        $region24: #{tpu_custom_call.1} parent=11 // pred_fallthru
          _
      $region12: #{tpu_custom_call.1} parent=5 // pred_fallthru
        _
      %p200 = scmp.lt.s32.totalorder %s17, 2
      // Predicated region
      $region25: #{tpu_custom_call.1} parent=5 // pred_check
        %p201 = pneg %p200
      $region26: #{tpu_custom_call.1} parent=5 // pred_check_branch
        %203 = sbr.rel (%p201) target = $region28
      $region27: #{tpu_custom_call.1} parent=5 // pred_region
        // Predicated region
        $region29: #{tpu_custom_call.1} parent=27 // pred_check
          %p204 = pneg %p58
        $region30: #{tpu_custom_call.1} parent=27 // pred_check_branch
          %206 = sbr.rel (%p204) target = $region32
        $region31: #{tpu_custom_call.1} parent=27 // pred_region
          %s207 = sand.u32 %s48, 1
          %s208 = scalar_lea.sflag [#allocation3], %s207
          %s209 = sand.u32 %s48, 1
          %s210 = smul.addr %s209, 8
          %s211 = scalar_lea.vmem [#allocation2], %s210
          %s213 = ssub.s32 128, 128
          %214 = vsyncadd %s208, %s213
          %s215 = sadd.s32 %s26, %s24
          %s216 = smul.addr %s215, 128
          %s217 = scalar_lea.hbm %s0, %s216
          %s219 = sshll.u32 %s211, 4
          %s220 = int_to_ptr.vmem [resolvable:$true] %s219
          %222 = dma.hbm_to_vmem [thread:$0]  %s217, 128, %s220, %s208
        $region32: #{tpu_custom_call.1} parent=27 // pred_fallthru
          _
      $region28: #{tpu_custom_call.1} parent=5 // pred_fallthru
        _
      %p223 = scmp.le.s32.totalorder 1, %s17
      %p224 = scmp.lt.s32.totalorder %s17, 3
      %p225 = pnand %p223, %p224
      %p226 = pneg %p225
      // Predicated region
      $region33: #{tpu_custom_call.1} parent=5 // pred_check
        _
      $region34: #{tpu_custom_call.1} parent=5 // pred_check_branch
        %228 = sbr.rel (%p225) target = $region36
      $region35: #{tpu_custom_call.1} parent=5 // pred_region
        %s229 = ssub.s32 %s17, 1
        %s230 = sand.u32 %s51, 1
        %s231 = scalar_lea.sflag [#allocation3], %s230
        %s232 = sand.u32 %s51, 1
        %s233 = smul.addr %s232, 8
        %s234 = scalar_lea.vmem [#allocation2], %s233
        // Predicated region
        $region37: #{tpu_custom_call.1} parent=35 // pred_check
          %p235 = pneg %p64
        $region38: #{tpu_custom_call.1} parent=35 // pred_check_branch
          %237 = sbr.rel (%p235) target = $region40
        $region39: #{tpu_custom_call.1} parent=35 // pred_region
          %238 = dma.done %s231, 128
        $region40: #{tpu_custom_call.1} parent=35 // pred_fallthru
          _
        // Predicated region
        $region41: #{tpu_custom_call.1} parent=35 // pred_check
          %p239 = pneg %p134
        $region42: #{tpu_custom_call.1} parent=35 // pred_check_branch
          %241 = sbr.rel (%p239) target = $region44
        $region43: #{tpu_custom_call.1} parent=35 // pred_region
          %242 = dma.done [#allocation6], 1024
        $region44: #{tpu_custom_call.1} parent=35 // pred_fallthru
          _
        %s243 = sand.u32 %s51, 1
        %s244 = scalar_lea.sflag [#allocation3], %s243
        %s245 = sand.u32 %s51, 1
        %s246 = smul.addr %s245, 8
        %s247 = scalar_lea.vmem [#allocation2], %s246
        %p248 = pneg %p64
        %p249 = pneg %p61
        %p250 = pneg %p85
        %p251 = pneg %p82
        %p252 = pneg %p106
        %p253 = pneg %p103
        %p254 = pneg %p134
        %p255 = pneg %p131
        %p256 = pneg %p162
        %p257 = pneg %p159
        %s258 = sand.u32 %s149, 1
        %s259 = scalar_lea.sflag [#allocation4], %s258
        %s260 = sand.u32 %s149, 1
        %s261 = smul.addr %s260, 8
        %s262 = scalar_lea.vmem [#allocation7], %s261
        %s263 = smul.u32 16, %s29
        %v265 = vld [vmem:[%s234] sm:$0xff]
        %s266 = scalar_lea.vmem %s1, %s29
        %v267 = vld [vmem:[%s266] sm:$0x1]
        %v269 = vlaneseq
        %v270 = vshrl.u32 %v269, 7
        %v271 = vsub.s32 0, %v270
        %v272 = vrot.slane %v267, %v271
        %v274 = vmul.f32 %v265, %v272
        %s275 = scalar_lea.vmem %s2, %s29
        %v276 = vld [vmem:[%s275] sm:$0x1]
        %v278 = vlaneseq
        %v279 = vshrl.u32 %v278, 7
        %v280 = vsub.s32 0, %v279
        %v281 = vrot.slane %v276, %v280
        %v283 = vadd.f32 %v274, %v281
        %vm284 = vcmp.ge.f32.partialorder %v283, 0.0
        %v285 = vmul.f32 %v283, 0.1
        %v286 = vsel %vm284, %v283, %v285
        %v287 = vpack.c.bf16 %v286, %v286
        %v288 = vld [vmem:[#allocation5] sm:$0xf]
        %v289 = vld [vmem:[#allocation5 + $0x4] sm:$0xf]
        %v290 = vld [vmem:[#allocation5 + $0x8] sm:$0xf]
        %v291 = vld [vmem:[#allocation5 + $0xc] sm:$0xf]
        %v292 = vld [vmem:[#allocation5 + $0x10] sm:$0xf]
        %v293 = vld [vmem:[#allocation5 + $0x14] sm:$0xf]
        %v294 = vld [vmem:[#allocation5 + $0x18] sm:$0xf]
        %v295 = vld [vmem:[#allocation5 + $0x1c] sm:$0xf]
        %v296 = vld [vmem:[#allocation5 + $0x20] sm:$0xf]
        %v297 = vld [vmem:[#allocation5 + $0x24] sm:$0xf]
        %v298 = vld [vmem:[#allocation5 + $0x28] sm:$0xf]
        %v299 = vld [vmem:[#allocation5 + $0x2c] sm:$0xf]
        %v300 = vld [vmem:[#allocation5 + $0x30] sm:$0xf]
        %v301 = vld [vmem:[#allocation5 + $0x34] sm:$0xf]
        %v302 = vld [vmem:[#allocation5 + $0x38] sm:$0xf]
        %v303 = vld [vmem:[#allocation5 + $0x3c] sm:$0xf]
        %v320 = vunpack.c.l.b16 %v288
        %v321 = vunpack.c.l.b16 %v289
        %v322 = vunpack.c.l.b16 %v290
        %v323 = vunpack.c.l.b16 %v291
        %v324 = vunpack.c.l.b16 %v292
        %v325 = vunpack.c.l.b16 %v293
        %v326 = vunpack.c.l.b16 %v294
        %v327 = vunpack.c.l.b16 %v295
        %v328 = vunpack.c.l.b16 %v296
        %v329 = vunpack.c.l.b16 %v297
        %v330 = vunpack.c.l.b16 %v298
        %v331 = vunpack.c.l.b16 %v299
        %v332 = vunpack.c.l.b16 %v300
        %v333 = vunpack.c.l.b16 %v301
        %v334 = vunpack.c.l.b16 %v302
        %v335 = vunpack.c.l.b16 %v303
        %v336 = vpack.c.b16 %v321, %v320
        %v337 = vpack.c.b16 %v323, %v322
        %v338 = vpack.c.b16 %v325, %v324
        %v339 = vpack.c.b16 %v327, %v326
        %v340 = vpack.c.b16 %v329, %v328
        %v341 = vpack.c.b16 %v331, %v330
        %v342 = vpack.c.b16 %v333, %v332
        %v343 = vpack.c.b16 %v335, %v334
        %352 = vmatprep.subr.bf16.mxu0 0
        %353 = vmatpush1.bf16.msra.mxu0 %v336
        %354 = vmatprep.subr.bf16.mxu0 0
        %355 = vmatpush1.bf16.msra.mxu0 %v337
        %356 = vmatprep.subr.bf16.mxu0 0
        %357 = vmatpush1.bf16.msra.mxu0 %v338
        %358 = vmatprep.subr.bf16.mxu0 0
        %359 = vmatpush1.bf16.msra.mxu0 %v339
        %360 = vmatprep.subr.bf16.mxu0 0
        %361 = vmatpush1.bf16.msra.mxu0 %v340
        %362 = vmatprep.subr.bf16.mxu0 0
        %363 = vmatpush1.bf16.msra.mxu0 %v341
        %364 = vmatprep.subr.bf16.mxu0 0
        %365 = vmatpush1.bf16.msra.mxu0 %v342
        %366 = vmatprep.subr.bf16.mxu0 0
        %367 = vmatpush1.bf16.msra.mxu0 %v343
        %368 = vmatprep.subr.bf16.mxu0 0
        %369 = vmatpush1.bf16.msra.mxu0 0
        %370 = vmatprep.subr.bf16.mxu0 0
        %371 = vmatpush1.bf16.msra.mxu0 0
        %372 = vmatprep.subr.bf16.mxu0 0
        %373 = vmatpush1.bf16.msra.mxu0 0
        %374 = vmatprep.subr.bf16.mxu0 0
        %375 = vmatpush1.bf16.msra.mxu0 0
        %376 = vmatprep.subr.bf16.mxu0 0
        %377 = vmatpush1.bf16.msra.mxu0 0
        %378 = vmatprep.subr.bf16.mxu0 0
        %379 = vmatpush1.bf16.msra.mxu0 0
        %380 = vmatprep.subr.bf16.mxu0 0
        %381 = vmatpush1.bf16.msra.mxu0 0
        %382 = vmatprep.subr.bf16.mxu0 0
        %383 = vmatpush1.bf16.msra.mxu0 0
        %384 = vmatprep.mubr.bf16.mxu0 0
        %385 = vmatmul.mubr.bf16.gmra.mrb[0].mxu0 %v287
        %v386 = vpop.f32.mrb[0].mxu0
        %v387 = vadd.f32 0.0, %v386
        %v388 = vpop.f32.mrb[0].mxu0
        %v389 = vpop.f32.mrb[0].mxu0
        %v390 = vpop.f32.mrb[0].mxu0
        %391 = vdwg.mxu0
        %p392 = scmp.eq.s32.totalorder %s29, 0
        // Predicated region
        $region45: #{tpu_custom_call.1} parent=35 // pred_check
          %p393 = pneg %p392
        $region46: #{tpu_custom_call.1} parent=35 // pred_check_branch
          %395 = sbr.rel (%p393) target = $region48
        $region47: #{tpu_custom_call.1} parent=35 // pred_region
          %396 = vst [vmem:[%s262] sm:$0xff] %v387
        $region48: #{tpu_custom_call.1} parent=35 // pred_fallthru
          _
        %p397 = scmp.ne.s32.totalorder %s29, 0
        // Predicated region
        $region49: #{tpu_custom_call.1} parent=35 // pred_check
          %p398 = pneg %p397
        $region50: #{tpu_custom_call.1} parent=35 // pred_check_branch
          %400 = sbr.rel (%p398) target = $region52
        $region51: #{tpu_custom_call.1} parent=35 // pred_region
          %v401 = vld [vmem:[%s262] sm:$0xff]
          %v402 = vadd.f32 %v401, %v387
          %403 = vst [vmem:[%s262] sm:$0xff] %v402
        $region52: #{tpu_custom_call.1} parent=35 // pred_fallthru
          _
        %s404 = sand.u32 %s149, 1
        %s405 = scalar_lea.sflag [#allocation4], %s404
        %s406 = sand.u32 %s149, 1
        %s407 = smul.addr %s406, 8
        %s408 = scalar_lea.vmem [#allocation7], %s407
        // Predicated region
        $region53: #{tpu_custom_call.1} parent=35 // pred_check
          %p409 = pneg %p159
        $region54: #{tpu_custom_call.1} parent=35 // pred_check_branch
          %411 = sbr.rel (%p409) target = $region56
        $region55: #{tpu_custom_call.1} parent=35 // pred_region
          %s413 = ssub.s32 128, 128
          %414 = vsyncadd %s405, %s413
          %s415 = sadd.s32 %s28, %s27
          %s416 = smul.addr %s415, 128
          %s417 = scalar_lea.hbm %s4, %s416
          %s419 = sshll.u32 %s408, 4
          %s420 = int_to_ptr.vmem [resolvable:$true] %s419
          %422 = dma.vmem_to_hbm [thread:$0]  %s420, 128, %s417, %s405
        $region56: #{tpu_custom_call.1} parent=35 // pred_fallthru
          _
      $region36: #{tpu_custom_call.1} parent=5 // pred_fallthru
        _
      %p423 = scmp.le.s32.totalorder 2, %s17
      // Predicated region
      $region57: #{tpu_custom_call.1} parent=5 // pred_check
        %p424 = pneg %p423
      $region58: #{tpu_custom_call.1} parent=5 // pred_check_branch
        %426 = sbr.rel (%p424) target = $region60
      $region59: #{tpu_custom_call.1} parent=5 // pred_region
        %s427 = ssub.s32 %s17, 2
        // Predicated region
        $region61: #{tpu_custom_call.1} parent=59 // pred_check
          %p428 = pneg %p165
        $region62: #{tpu_custom_call.1} parent=59 // pred_check_branch
          %430 = sbr.rel (%p428) target = $region64
        $region63: #{tpu_custom_call.1} parent=59 // pred_region
          %s431 = sand.u32 %s150, 1
          %s432 = scalar_lea.sflag [#allocation4], %s431
          %s433 = sand.u32 %s150, 1
          %s434 = smul.addr %s433, 8
          %s435 = scalar_lea.vmem [#allocation7], %s434
          %436 = dma.done %s432, 128
        $region64: #{tpu_custom_call.1} parent=59 // pred_fallthru
          _
      $region60: #{tpu_custom_call.1} parent=5 // pred_fallthru
        _
    $region6: #{tpu_custom_call.1} parent=1 // loop_footer
      %s21 = sadd.s32 1, %s17
    $region7: #{tpu_custom_call.1} parent=1 // loop_footer_branch
      %16 = sbr.rel target = $region3
    $region8: #{tpu_custom_call.1} parent=1 // loop_exit
      _
    %437 = vsyncpa [#allocation3], 1
    %s438 = scalar_lea.sflag [#allocation3], 1
    %439 = vsyncpa %s438, 1
    %440 = vsyncpa [#allocation6], 1
    %441 = vsyncpa [#allocation4], 1
    %s442 = scalar_lea.sflag [#allocation4], 1
    %443 = vsyncpa %s442, 1

</llo_original>
